<compile_context>
chip_gen: v7x
topology: tpu7x:2x2x1
jax: 0.10.0
libtpu: 0.0.40
codegen_flags: <defaults>
</compile_context>

<pallas_src>
import numpy as np
import jax
import jax.numpy as jnp
from jax import lax
from jax.experimental import pallas as pl
from jax.experimental.pallas import tpu as pltpu

N = 99                        # number of pulse steps (from the PyTorch module)
DIM = 4
OMEGA_MAX = 1.0
SQRT2 = float(np.sqrt(2.0))
PI = float(np.pi)
TWO_PI = float(2.0 * np.pi)

LANES = 128                   # lane k <-> pulse step k (99 live, rest identity)
LEVELS = 7                    # log2(LANES) roll-combine levels


def _qubits2_kernel(scal_ref, data_ref, out_ref):
    # scal_ref : SMEM (2,)    = [T, theta]
    # data_ref : VMEM (8,128)   row0 = phi (padded to 128)
    #                           row1 = [psi0_r psi1_r psi0_i psi1_i 0...]
    #                           row2 = [psi2_r psi3_r psi2_i psi3_i 0...]
    data = data_ref[...]                                    # one full-vreg load
    t = scal_ref[0]                                         # total evolution time T
    th = scal_ref[1]                                        # theta

    # ---- per-step SU(2) Cayley-Klein coefficients, all steps at once -----------
    rid = lax.broadcasted_iota(jnp.int32, (8, 1), 0)        # sublane index
    # (Rabi rate * dt) per unit T: row0 -> block{0,1}, row1 -> block{2,3}, rest inert
    rate = jnp.where(rid == 0, 0.5 * OMEGA_MAX / N,
                     jnp.where(rid == 1, OMEGA_MAX / (SQRT2 * N), 0.0))
    r = rate * t                                            # (8,1)
    c = jnp.cos(r)
    s = jnp.sin(r)

    # mod(phi, 2*pi) dropped: cos/sin range-reduce, identical values.
    phi_row = data[0:1, :]                                  # (1,128)
    cp = jnp.cos(phi_row)
    sp = jnp.sin(phi_row)

    lane = lax.broadcasted_iota(jnp.int32, (1, LANES), 1)
    valid = lane < N                                        # lanes >= N -> identity

    # exp(-i*dt*H_block) = [[a, b], [-conj(b), conj(a)]],
    #   a = cos(r) (real),  b = s*sin(phi) - i*s*cos(phi)
    ar = jnp.where(valid, c, 1.0)                           # (8,128)
    ai = jnp.zeros((8, LANES), jnp.float32)
    br = jnp.where(valid, s * sp, 0.0)
    bi = jnp.where(valid, -(s * cp), 0.0)

    # ---- ordered product U_{N-1} @ ... @ U_0: 7 roll-combine levels -------------
    def ck_mul(left, right):                                # SU(2) compose: left @ right
        aLr, aLi, bLr, bLi = left
        aRr, aRi, bRr, bRi = right
        return (aLr * aRr - aLi * aRi - bLr * bRr - bLi * bRi,
                aLr * aRi + aLi * aRr - bLi * bRr + bLr * bRi,
                aLr * bRr - aLi * bRi + bLr * aRr + bLi * aRi,
                aLr * bRi + aLi * bRr + bLi * aRr - bLr * aRi)

    u = (ar, ai, br, bi)
    for level in range(LEVELS):                             # fully unrolled (7 iters)
        step = 1 << level
        shift = LANES - step                                # lane k picks up lane k+step
        left = tuple(pltpu.roll(x, shift, axis=1) for x in u)
        u = ck_mul(left, u)                                 # later steps on the LEFT
    # full product sits in lane 0; rows 0/1 are blocks {0,1}/{2,3}
    uar = u[0][0:2, 0:1]
    uai = u[1][0:2, 0:1]
    ubr = u[2][0:2, 0:1]
    ubi = u[3][0:2, 0:1]

    # ---- psi_f rows 0 and 2, then fidelity --------------------------------------
    pa_r = data[1:3, 0:1]                                   # [[psi0_r],[psi2_r]]
    pb_r = data[1:3, 1:2]                                   # [[psi1_r],[psi3_r]]
    pa_i = data[1:3, 2:3]
    pb_i = data[1:3, 3:4]

    pf_r = uar * pa_r - uai * pa_i + ubr * pb_r - ubi * pb_i   # [<0|psi_f>, <2|psi_f>]
    pf_i = uar * pa_i + uai * pa_r + ubr * pb_i + ubi * pb_r

    rid2 = rid[0:2]                                         # (2,1)
    # phases: row0 = theta, row1 = 2*theta + pi  (scalar only ever splatted into vectors)
    phase = jnp.where(rid2 == 0, 1.0, 2.0) * th + jnp.where(rid2 == 0, 0.0, PI)
    cph = jnp.cos(phase)
    sph = jnp.sin(phase)
    acr = cph * pf_r + sph * pf_i                           # exp(-i*phase) * <k|psi_f>
    aci = cph * pf_i - sph * pf_r

    a01r = acr[0:1, :]; a01i = aci[0:1, :]
    a11r = acr[1:2, :]; a11i = aci[1:2, :]
    zr = 1.0 + 2.0 * a01r + a11r
    zi = 2.0 * a01i + a11i
    f = 0.05 * (zr * zr + zi * zi + 1.0
                + 2.0 * (a01r * a01r + a01i * a01i)
                + a11r * a11r + a11i * a11i)
    out_ref[...] = jnp.clip(f, 0.0, 1.0)


@jax.jit
def qubits2_forward(theta, phi, T, psi_r, psi_i):
    phi = phi.astype(jnp.float32)
    psi_r = psi_r.astype(jnp.float32)
    psi_i = psi_i.astype(jnp.float32)

    # ONE lane-dense (8,128) VMEM input: phi in row 0, psi components in rows 1-2.
    data = jnp.zeros((8, LANES), jnp.float32)
    data = data.at[0, :N].set(phi)
    data = data.at[1, 0:4].set(jnp.stack([psi_r[0], psi_r[1], psi_i[0], psi_i[1]]))
    data = data.at[2, 0:4].set(jnp.stack([psi_r[2], psi_r[3], psi_i[2], psi_i[3]]))

    # True scalars live in SMEM.
    scal = jnp.stack([jnp.asarray(T, jnp.float32).reshape(()),
                      jnp.asarray(theta, jnp.float32).reshape(())])

    # TODO(synk): when optimizing many (theta, phi) candidates, batch them over a
    # grid axis with dimension_semantics=("parallel",) to use both v7x TensorCores.
    out = pl.pallas_call(
        _qubits2_kernel,
        out_shape=jax.ShapeDtypeStruct((1, 1), jnp.float32),
        in_specs=[pl.BlockSpec(memory_space=pltpu.MemorySpace.SMEM),
                  pl.BlockSpec(memory_space=pltpu.MemorySpace.VMEM)],
        out_specs=pl.BlockSpec(memory_space=pltpu.MemorySpace.VMEM),
    )(scal, data)
    return out.reshape(1)          # matches torch output shape (1,)


def _reference_forward_np(theta, phi, T, psi_in):
    """Independent complex128 reference (eigendecomposition-based matrix exp)."""
    n = phi.shape[0]
    theta = np.mod(float(theta), 2 * np.pi)
    phi = np.mod(phi.astype(np.float64), 2 * np.pi)
    dt = T / n
    omega = OMEGA_MAX * np.exp(1j * phi)
    U = np.eye(DIM, dtype=np.complex128)
    for k in range(n):
        H = np.zeros((DIM, DIM), dtype=np.complex128)
        H[0, 1] = omega[k] / 2.0
        H[1, 0] = np.conj(omega[k]) / 2.0
        H[2, 3] = omega[k] / np.sqrt(2.0)
        H[3, 2] = np.conj(omega[k]) / np.sqrt(2.0)
        w, V = np.linalg.eigh(H)
        U_step = V @ np.diag(np.exp(-1j * w * dt)) @ V.conj().T
        U = U_step @ U
    psi_f = U @ psi_in
    a01 = np.exp(-1j * theta) * psi_f[0]
    a11 = np.exp(-1j * (2 * theta + np.pi)) * psi_f[2]
    F = 0.05 * (np.abs(1 + 2 * a01 + a11) ** 2 + 1
                + 2 * np.abs(a01) ** 2 + np.abs(a11) ** 2)
    return float(np.clip(np.real(F), 0.0, 1.0))


if __name__ == "__main__":
    key = jax.random.PRNGKey(0)
    k_theta, k_phi, k_pr, k_pi = jax.random.split(key, 4)

    # Deterministic "parameters" mirroring nn.Parameter init in __init__.
    theta = jax.random.uniform(k_theta, (1,), dtype=jnp.float32) * TWO_PI
    phi = jax.random.uniform(k_phi, (N,), dtype=jnp.float32) * TWO_PI

    # Forward inputs: total time T and a normalized complex input state psi_in.
    T = 1.0
    psi_r = jax.random.normal(k_pr, (DIM,), dtype=jnp.float32)
    psi_i = jax.random.normal(k_pi, (DIM,), dtype=jnp.float32)
    norm = jnp.sqrt(jnp.sum(psi_r ** 2 + psi_i ** 2))
    psi_r = psi_r / norm
    psi_i = psi_i / norm

    F = qubits2_forward(theta, phi, T, psi_r, psi_i)
    F = jax.block_until_ready(F)

    # Sanity check against an independent complex128 numpy reference.
    psi_np = np.asarray(psi_r, np.float64) + 1j * np.asarray(psi_i, np.float64)
    F_ref = _reference_forward_np(np.asarray(theta)[0], np.asarray(phi), T, psi_np)
    assert abs(float(F[0]) - F_ref) < 5e-3, (float(F[0]), F_ref)

    print("KERNEL_OK")
</pallas_src>

<mosaic_0001>
module attributes {stable_mosaic.version = 11 : i64} {
  func.func @_qubits2_kernel(%arg0: memref<2xf32, #tpu.memory_space<smem>>, %arg1: memref<8x128xf32, #tpu.memory_space<vmem>>, %arg2: memref<1x1xf32, #tpu.memory_space<vmem>>) attributes {dimension_semantics = [], scalar_prefetch = 0 : i64, scratch_operands = 0 : i64, tpu.core_type = #tpu.core_type<tc>} {
    %c0 = arith.constant 0 : index
    %c0_0 = arith.constant 0 : index
    %0 = vector.load %arg1[%c0, %c0_0] : memref<8x128xf32, #tpu.memory_space<vmem>>, vector<8x128xf32>
    %c0_1 = arith.constant 0 : index
    %1 = memref.load %arg0[%c0_1] : memref<2xf32, #tpu.memory_space<smem>>
    %c1 = arith.constant 1 : index
    %2 = memref.load %arg0[%c1] : memref<2xf32, #tpu.memory_space<smem>>
    %3 = tpu.iota {dimensions = array<i32: 0>} : vector<8x1xi32>
    %c0_i32 = arith.constant 0 : i32
    %4 = vector.broadcast %c0_i32 : i32 to vector<8x1xi32>
    %5 = arith.cmpi eq, %3, %4 : vector<8x1xi32>
    %c1_i32 = arith.constant 1 : i32
    %6 = vector.broadcast %c1_i32 : i32 to vector<8x1xi32>
    %7 = arith.cmpi eq, %3, %6 : vector<8x1xi32>
    %cst = arith.constant 0.00714249257 : f32
    %cst_2 = arith.constant 0.000000e+00 : f32
    %8 = vector.broadcast %cst : f32 to vector<8x1xf32>
    %9 = vector.broadcast %cst_2 : f32 to vector<8x1xf32>
    %10 = arith.select %7, %8, %9 : vector<8x1xi1>, vector<8x1xf32>
    %cst_3 = arith.constant 0.00505050505 : f32
    %11 = vector.broadcast %cst_3 : f32 to vector<8x1xf32>
    %12 = arith.select %5, %11, %10 : vector<8x1xi1>, vector<8x1xf32>
    %13 = vector.broadcast %1 : f32 to vector<8x1xf32>
    %14 = arith.mulf %12, %13 : vector<8x1xf32>
    %15 = math.cos %14 : vector<8x1xf32>
    %16 = math.sin %14 : vector<8x1xf32>
    %17 = vector.extract_strided_slice %0 {offsets = [0, 0], sizes = [1, 128], strides = [1, 1]} : vector<8x128xf32> to vector<1x128xf32>
    %18 = math.cos %17 : vector<1x128xf32>
    %19 = math.sin %17 : vector<1x128xf32>
    %20 = tpu.iota {dimensions = array<i32: 1>} : vector<1x128xi32>
    %c99_i32 = arith.constant 99 : i32
    %21 = vector.broadcast %c99_i32 : i32 to vector<1x128xi32>
    %22 = arith.cmpi slt, %20, %21 : vector<1x128xi32>
    %cst_4 = arith.constant 1.000000e+00 : f32
    %23 = vector.shape_cast %22 : vector<1x128xi1> to vector<1x128xi1>
    %24 = vector.broadcast %23 : vector<1x128xi1> to vector<8x128xi1>
    %25 = vector.shape_cast %15 : vector<8x1xf32> to vector<8x1xf32>
    %26 = vector.broadcast %25 : vector<8x1xf32> to vector<8x128xf32>
    %27 = vector.broadcast %cst_4 : f32 to vector<8x128xf32>
    %28 = arith.select %24, %26, %27 : vector<8x128xi1>, vector<8x128xf32>
    %cst_5 = arith.constant 0.000000e+00 : f32
    %29 = vector.broadcast %cst_5 : f32 to vector<8x128xf32>
    %30 = vector.broadcast %16 : vector<8x1xf32> to vector<8x128xf32>
    %31 = vector.broadcast %19 : vector<1x128xf32> to vector<8x128xf32>
    %32 = arith.mulf %30, %31 : vector<8x128xf32>
    %cst_6 = arith.constant 0.000000e+00 : f32
    %33 = vector.shape_cast %22 : vector<1x128xi1> to vector<1x128xi1>
    %34 = vector.broadcast %33 : vector<1x128xi1> to vector<8x128xi1>
    %35 = vector.broadcast %cst_6 : f32 to vector<8x128xf32>
    %36 = arith.select %34, %32, %35 : vector<8x128xi1>, vector<8x128xf32>
    %37 = vector.broadcast %16 : vector<8x1xf32> to vector<8x128xf32>
    %38 = vector.broadcast %18 : vector<1x128xf32> to vector<8x128xf32>
    %39 = arith.mulf %37, %38 : vector<8x128xf32>
    %cst_7 = arith.constant 0.000000e+00 : f32
    %40 = vector.broadcast %cst_7 : f32 to vector<8x128xf32>
    %41 = arith.subf %40, %39 : vector<8x128xf32>
    %cst_8 = arith.constant 0.000000e+00 : f32
    %42 = vector.shape_cast %22 : vector<1x128xi1> to vector<1x128xi1>
    %43 = vector.broadcast %42 : vector<1x128xi1> to vector<8x128xi1>
    %44 = vector.broadcast %cst_8 : f32 to vector<8x128xf32>
    %45 = arith.select %43, %41, %44 : vector<8x128xi1>, vector<8x128xf32>
    %c127_i32 = arith.constant 127 : i32
    %46 = tpu.dynamic_rotate %28 by %c127_i32 dim 1 : vector<8x128xf32>, i32 -> vector<8x128xf32>
    %c127_i32_9 = arith.constant 127 : i32
    %47 = tpu.dynamic_rotate %29 by %c127_i32_9 dim 1 : vector<8x128xf32>, i32 -> vector<8x128xf32>
    %c127_i32_10 = arith.constant 127 : i32
    %48 = tpu.dynamic_rotate %36 by %c127_i32_10 dim 1 : vector<8x128xf32>, i32 -> vector<8x128xf32>
    %c127_i32_11 = arith.constant 127 : i32
    %49 = tpu.dynamic_rotate %45 by %c127_i32_11 dim 1 : vector<8x128xf32>, i32 -> vector<8x128xf32>
    %50 = arith.mulf %46, %28 : vector<8x128xf32>
    %51 = arith.mulf %47, %29 : vector<8x128xf32>
    %52 = arith.subf %50, %51 : vector<8x128xf32>
    %53 = arith.mulf %48, %36 : vector<8x128xf32>
    %54 = arith.subf %52, %53 : vector<8x128xf32>
    %55 = arith.mulf %49, %45 : vector<8x128xf32>
    %56 = arith.subf %54, %55 : vector<8x128xf32>
    %57 = arith.mulf %46, %29 : vector<8x128xf32>
    %58 = arith.mulf %47, %28 : vector<8x128xf32>
    %59 = arith.addf %57, %58 : vector<8x128xf32>
    %60 = arith.mulf %49, %36 : vector<8x128xf32>
    %61 = arith.subf %59, %60 : vector<8x128xf32>
    %62 = arith.mulf %48, %45 : vector<8x128xf32>
    %63 = arith.addf %61, %62 : vector<8x128xf32>
    %64 = arith.mulf %46, %36 : vector<8x128xf32>
    %65 = arith.mulf %47, %45 : vector<8x128xf32>
    %66 = arith.subf %64, %65 : vector<8x128xf32>
    %67 = arith.mulf %48, %28 : vector<8x128xf32>
    %68 = arith.addf %66, %67 : vector<8x128xf32>
    %69 = arith.mulf %49, %29 : vector<8x128xf32>
    %70 = arith.addf %68, %69 : vector<8x128xf32>
    %71 = arith.mulf %46, %45 : vector<8x128xf32>
    %72 = arith.mulf %47, %36 : vector<8x128xf32>
    %73 = arith.addf %71, %72 : vector<8x128xf32>
    %74 = arith.mulf %49, %28 : vector<8x128xf32>
    %75 = arith.addf %73, %74 : vector<8x128xf32>
    %76 = arith.mulf %48, %29 : vector<8x128xf32>
    %77 = arith.subf %75, %76 : vector<8x128xf32>
    %c126_i32 = arith.constant 126 : i32
    %78 = tpu.dynamic_rotate %56 by %c126_i32 dim 1 : vector<8x128xf32>, i32 -> vector<8x128xf32>
    %c126_i32_12 = arith.constant 126 : i32
    %79 = tpu.dynamic_rotate %63 by %c126_i32_12 dim 1 : vector<8x128xf32>, i32 -> vector<8x128xf32>
    %c126_i32_13 = arith.constant 126 : i32
    %80 = tpu.dynamic_rotate %70 by %c126_i32_13 dim 1 : vector<8x128xf32>, i32 -> vector<8x128xf32>
    %c126_i32_14 = arith.constant 126 : i32
    %81 = tpu.dynamic_rotate %77 by %c126_i32_14 dim 1 : vector<8x128xf32>, i32 -> vector<8x128xf32>
    %82 = arith.mulf %78, %56 : vector<8x128xf32>
    %83 = arith.mulf %79, %63 : vector<8x128xf32>
    %84 = arith.subf %82, %83 : vector<8x128xf32>
    %85 = arith.mulf %80, %70 : vector<8x128xf32>
    %86 = arith.subf %84, %85 : vector<8x128xf32>
    %87 = arith.mulf %81, %77 : vector<8x128xf32>
    %88 = arith.subf %86, %87 : vector<8x128xf32>
    %89 = arith.mulf %78, %63 : vector<8x128xf32>
    %90 = arith.mulf %79, %56 : vector<8x128xf32>
    %91 = arith.addf %89, %90 : vector<8x128xf32>
    %92 = arith.mulf %81, %70 : vector<8x128xf32>
    %93 = arith.subf %91, %92 : vector<8x128xf32>
    %94 = arith.mulf %80, %77 : vector<8x128xf32>
    %95 = arith.addf %93, %94 : vector<8x128xf32>
    %96 = arith.mulf %78, %70 : vector<8x128xf32>
    %97 = arith.mulf %79, %77 : vector<8x128xf32>
    %98 = arith.subf %96, %97 : vector<8x128xf32>
    %99 = arith.mulf %80, %56 : vector<8x128xf32>
    %100 = arith.addf %98, %99 : vector<8x128xf32>
    %101 = arith.mulf %81, %63 : vector<8x128xf32>
    %102 = arith.addf %100, %101 : vector<8x128xf32>
    %103 = arith.mulf %78, %77 : vector<8x128xf32>
    %104 = arith.mulf %79, %70 : vector<8x128xf32>
    %105 = arith.addf %103, %104 : vector<8x128xf32>
    %106 = arith.mulf %81, %56 : vector<8x128xf32>
    %107 = arith.addf %105, %106 : vector<8x128xf32>
    %108 = arith.mulf %80, %63 : vector<8x128xf32>
    %109 = arith.subf %107, %108 : vector<8x128xf32>
    %c124_i32 = arith.constant 124 : i32
    %110 = tpu.dynamic_rotate %88 by %c124_i32 dim 1 : vector<8x128xf32>, i32 -> vector<8x128xf32>
    %c124_i32_15 = arith.constant 124 : i32
    %111 = tpu.dynamic_rotate %95 by %c124_i32_15 dim 1 : vector<8x128xf32>, i32 -> vector<8x128xf32>
    %c124_i32_16 = arith.constant 124 : i32
    %112 = tpu.dynamic_rotate %102 by %c124_i32_16 dim 1 : vector<8x128xf32>, i32 -> vector<8x128xf32>
    %c124_i32_17 = arith.constant 124 : i32
    %113 = tpu.dynamic_rotate %109 by %c124_i32_17 dim 1 : vector<8x128xf32>, i32 -> vector<8x128xf32>
    %114 = arith.mulf %110, %88 : vector<8x128xf32>
    %115 = arith.mulf %111, %95 : vector<8x128xf32>
    %116 = arith.subf %114, %115 : vector<8x128xf32>
    %117 = arith.mulf %112, %102 : vector<8x128xf32>
    %118 = arith.subf %116, %117 : vector<8x128xf32>
    %119 = arith.mulf %113, %109 : vector<8x128xf32>
    %120 = arith.subf %118, %119 : vector<8x128xf32>
    %121 = arith.mulf %110, %95 : vector<8x128xf32>
    %122 = arith.mulf %111, %88 : vector<8x128xf32>
    %123 = arith.addf %121, %122 : vector<8x128xf32>
    %124 = arith.mulf %113, %102 : vector<8x128xf32>
    %125 = arith.subf %123, %124 : vector<8x128xf32>
    %126 = arith.mulf %112, %109 : vector<8x128xf32>
    %127 = arith.addf %125, %126 : vector<8x128xf32>
    %128 = arith.mulf %110, %102 : vector<8x128xf32>
    %129 = arith.mulf %111, %109 : vector<8x128xf32>
    %130 = arith.subf %128, %129 : vector<8x128xf32>
    %131 = arith.mulf %112, %88 : vector<8x128xf32>
    %132 = arith.addf %130, %131 : vector<8x128xf32>
    %133 = arith.mulf %113, %95 : vector<8x128xf32>
    %134 = arith.addf %132, %133 : vector<8x128xf32>
    %135 = arith.mulf %110, %109 : vector<8x128xf32>
    %136 = arith.mulf %111, %102 : vector<8x128xf32>
    %137 = arith.addf %135, %136 : vector<8x128xf32>
    %138 = arith.mulf %113, %88 : vector<8x128xf32>
    %139 = arith.addf %137, %138 : vector<8x128xf32>
    %140 = arith.mulf %112, %95 : vector<8x128xf32>
    %141 = arith.subf %139, %140 : vector<8x128xf32>
    %c120_i32 = arith.constant 120 : i32
    %142 = tpu.dynamic_rotate %120 by %c120_i32 dim 1 : vector<8x128xf32>, i32 -> vector<8x128xf32>
    %c120_i32_18 = arith.constant 120 : i32
    %143 = tpu.dynamic_rotate %127 by %c120_i32_18 dim 1 : vector<8x128xf32>, i32 -> vector<8x128xf32>
    %c120_i32_19 = arith.constant 120 : i32
    %144 = tpu.dynamic_rotate %134 by %c120_i32_19 dim 1 : vector<8x128xf32>, i32 -> vector<8x128xf32>
    %c120_i32_20 = arith.constant 120 : i32
    %145 = tpu.dynamic_rotate %141 by %c120_i32_20 dim 1 : vector<8x128xf32>, i32 -> vector<8x128xf32>
    %146 = arith.mulf %142, %120 : vector<8x128xf32>
    %147 = arith.mulf %143, %127 : vector<8x128xf32>
    %148 = arith.subf %146, %147 : vector<8x128xf32>
    %149 = arith.mulf %144, %134 : vector<8x128xf32>
    %150 = arith.subf %148, %149 : vector<8x128xf32>
    %151 = arith.mulf %145, %141 : vector<8x128xf32>
    %152 = arith.subf %150, %151 : vector<8x128xf32>
    %153 = arith.mulf %142, %127 : vector<8x128xf32>
    %154 = arith.mulf %143, %120 : vector<8x128xf32>
    %155 = arith.addf %153, %154 : vector<8x128xf32>
    %156 = arith.mulf %145, %134 : vector<8x128xf32>
    %157 = arith.subf %155, %156 : vector<8x128xf32>
    %158 = arith.mulf %144, %141 : vector<8x128xf32>
    %159 = arith.addf %157, %158 : vector<8x128xf32>
    %160 = arith.mulf %142, %134 : vector<8x128xf32>
    %161 = arith.mulf %143, %141 : vector<8x128xf32>
    %162 = arith.subf %160, %161 : vector<8x128xf32>
    %163 = arith.mulf %144, %120 : vector<8x128xf32>
    %164 = arith.addf %162, %163 : vector<8x128xf32>
    %165 = arith.mulf %145, %127 : vector<8x128xf32>
    %166 = arith.addf %164, %165 : vector<8x128xf32>
    %167 = arith.mulf %142, %141 : vector<8x128xf32>
    %168 = arith.mulf %143, %134 : vector<8x128xf32>
    %169 = arith.addf %167, %168 : vector<8x128xf32>
    %170 = arith.mulf %145, %120 : vector<8x128xf32>
    %171 = arith.addf %169, %170 : vector<8x128xf32>
    %172 = arith.mulf %144, %127 : vector<8x128xf32>
    %173 = arith.subf %171, %172 : vector<8x128xf32>
    %c112_i32 = arith.constant 112 : i32
    %174 = tpu.dynamic_rotate %152 by %c112_i32 dim 1 : vector<8x128xf32>, i32 -> vector<8x128xf32>
    %c112_i32_21 = arith.constant 112 : i32
    %175 = tpu.dynamic_rotate %159 by %c112_i32_21 dim 1 : vector<8x128xf32>, i32 -> vector<8x128xf32>
    %c112_i32_22 = arith.constant 112 : i32
    %176 = tpu.dynamic_rotate %166 by %c112_i32_22 dim 1 : vector<8x128xf32>, i32 -> vector<8x128xf32>
    %c112_i32_23 = arith.constant 112 : i32
    %177 = tpu.dynamic_rotate %173 by %c112_i32_23 dim 1 : vector<8x128xf32>, i32 -> vector<8x128xf32>
    %178 = arith.mulf %174, %152 : vector<8x128xf32>
    %179 = arith.mulf %175, %159 : vector<8x128xf32>
    %180 = arith.subf %178, %179 : vector<8x128xf32>
    %181 = arith.mulf %176, %166 : vector<8x128xf32>
    %182 = arith.subf %180, %181 : vector<8x128xf32>
    %183 = arith.mulf %177, %173 : vector<8x128xf32>
    %184 = arith.subf %182, %183 : vector<8x128xf32>
    %185 = arith.mulf %174, %159 : vector<8x128xf32>
    %186 = arith.mulf %175, %152 : vector<8x128xf32>
    %187 = arith.addf %185, %186 : vector<8x128xf32>
    %188 = arith.mulf %177, %166 : vector<8x128xf32>
    %189 = arith.subf %187, %188 : vector<8x128xf32>
    %190 = arith.mulf %176, %173 : vector<8x128xf32>
    %191 = arith.addf %189, %190 : vector<8x128xf32>
    %192 = arith.mulf %174, %166 : vector<8x128xf32>
    %193 = arith.mulf %175, %173 : vector<8x128xf32>
    %194 = arith.subf %192, %193 : vector<8x128xf32>
    %195 = arith.mulf %176, %152 : vector<8x128xf32>
    %196 = arith.addf %194, %195 : vector<8x128xf32>
    %197 = arith.mulf %177, %159 : vector<8x128xf32>
    %198 = arith.addf %196, %197 : vector<8x128xf32>
    %199 = arith.mulf %174, %173 : vector<8x128xf32>
    %200 = arith.mulf %175, %166 : vector<8x128xf32>
    %201 = arith.addf %199, %200 : vector<8x128xf32>
    %202 = arith.mulf %177, %152 : vector<8x128xf32>
    %203 = arith.addf %201, %202 : vector<8x128xf32>
    %204 = arith.mulf %176, %159 : vector<8x128xf32>
    %205 = arith.subf %203, %204 : vector<8x128xf32>
    %c96_i32 = arith.constant 96 : i32
    %206 = tpu.dynamic_rotate %184 by %c96_i32 dim 1 : vector<8x128xf32>, i32 -> vector<8x128xf32>
    %c96_i32_24 = arith.constant 96 : i32
    %207 = tpu.dynamic_rotate %191 by %c96_i32_24 dim 1 : vector<8x128xf32>, i32 -> vector<8x128xf32>
    %c96_i32_25 = arith.constant 96 : i32
    %208 = tpu.dynamic_rotate %198 by %c96_i32_25 dim 1 : vector<8x128xf32>, i32 -> vector<8x128xf32>
    %c96_i32_26 = arith.constant 96 : i32
    %209 = tpu.dynamic_rotate %205 by %c96_i32_26 dim 1 : vector<8x128xf32>, i32 -> vector<8x128xf32>
    %210 = arith.mulf %206, %184 : vector<8x128xf32>
    %211 = arith.mulf %207, %191 : vector<8x128xf32>
    %212 = arith.subf %210, %211 : vector<8x128xf32>
    %213 = arith.mulf %208, %198 : vector<8x128xf32>
    %214 = arith.subf %212, %213 : vector<8x128xf32>
    %215 = arith.mulf %209, %205 : vector<8x128xf32>
    %216 = arith.subf %214, %215 : vector<8x128xf32>
    %217 = arith.mulf %206, %191 : vector<8x128xf32>
    %218 = arith.mulf %207, %184 : vector<8x128xf32>
    %219 = arith.addf %217, %218 : vector<8x128xf32>
    %220 = arith.mulf %209, %198 : vector<8x128xf32>
    %221 = arith.subf %219, %220 : vector<8x128xf32>
    %222 = arith.mulf %208, %205 : vector<8x128xf32>
    %223 = arith.addf %221, %222 : vector<8x128xf32>
    %224 = arith.mulf %206, %198 : vector<8x128xf32>
    %225 = arith.mulf %207, %205 : vector<8x128xf32>
    %226 = arith.subf %224, %225 : vector<8x128xf32>
    %227 = arith.mulf %208, %184 : vector<8x128xf32>
    %228 = arith.addf %226, %227 : vector<8x128xf32>
    %229 = arith.mulf %209, %191 : vector<8x128xf32>
    %230 = arith.addf %228, %229 : vector<8x128xf32>
    %231 = arith.mulf %206, %205 : vector<8x128xf32>
    %232 = arith.mulf %207, %198 : vector<8x128xf32>
    %233 = arith.addf %231, %232 : vector<8x128xf32>
    %234 = arith.mulf %209, %184 : vector<8x128xf32>
    %235 = arith.addf %233, %234 : vector<8x128xf32>
    %236 = arith.mulf %208, %191 : vector<8x128xf32>
    %237 = arith.subf %235, %236 : vector<8x128xf32>
    %c64_i32 = arith.constant 64 : i32
    %238 = tpu.dynamic_rotate %216 by %c64_i32 dim 1 : vector<8x128xf32>, i32 -> vector<8x128xf32>
    %c64_i32_27 = arith.constant 64 : i32
    %239 = tpu.dynamic_rotate %223 by %c64_i32_27 dim 1 : vector<8x128xf32>, i32 -> vector<8x128xf32>
    %c64_i32_28 = arith.constant 64 : i32
    %240 = tpu.dynamic_rotate %230 by %c64_i32_28 dim 1 : vector<8x128xf32>, i32 -> vector<8x128xf32>
    %c64_i32_29 = arith.constant 64 : i32
    %241 = tpu.dynamic_rotate %237 by %c64_i32_29 dim 1 : vector<8x128xf32>, i32 -> vector<8x128xf32>
    %242 = arith.mulf %238, %216 : vector<8x128xf32>
    %243 = arith.mulf %239, %223 : vector<8x128xf32>
    %244 = arith.subf %242, %243 : vector<8x128xf32>
    %245 = arith.mulf %240, %230 : vector<8x128xf32>
    %246 = arith.subf %244, %245 : vector<8x128xf32>
    %247 = arith.mulf %241, %237 : vector<8x128xf32>
    %248 = arith.subf %246, %247 : vector<8x128xf32>
    %249 = arith.mulf %238, %223 : vector<8x128xf32>
    %250 = arith.mulf %239, %216 : vector<8x128xf32>
    %251 = arith.addf %249, %250 : vector<8x128xf32>
    %252 = arith.mulf %241, %230 : vector<8x128xf32>
    %253 = arith.subf %251, %252 : vector<8x128xf32>
    %254 = arith.mulf %240, %237 : vector<8x128xf32>
    %255 = arith.addf %253, %254 : vector<8x128xf32>
    %256 = arith.mulf %238, %230 : vector<8x128xf32>
    %257 = arith.mulf %239, %237 : vector<8x128xf32>
    %258 = arith.subf %256, %257 : vector<8x128xf32>
    %259 = arith.mulf %240, %216 : vector<8x128xf32>
    %260 = arith.addf %258, %259 : vector<8x128xf32>
    %261 = arith.mulf %241, %223 : vector<8x128xf32>
    %262 = arith.addf %260, %261 : vector<8x128xf32>
    %263 = arith.mulf %238, %237 : vector<8x128xf32>
    %264 = arith.mulf %239, %230 : vector<8x128xf32>
    %265 = arith.addf %263, %264 : vector<8x128xf32>
    %266 = arith.mulf %241, %216 : vector<8x128xf32>
    %267 = arith.addf %265, %266 : vector<8x128xf32>
    %268 = arith.mulf %240, %223 : vector<8x128xf32>
    %269 = arith.subf %267, %268 : vector<8x128xf32>
    %270 = vector.extract_strided_slice %248 {offsets = [0, 0], sizes = [2, 1], strides = [1, 1]} : vector<8x128xf32> to vector<2x1xf32>
    %271 = vector.extract_strided_slice %255 {offsets = [0, 0], sizes = [2, 1], strides = [1, 1]} : vector<8x128xf32> to vector<2x1xf32>
    %272 = vector.extract_strided_slice %262 {offsets = [0, 0], sizes = [2, 1], strides = [1, 1]} : vector<8x128xf32> to vector<2x1xf32>
    %273 = vector.extract_strided_slice %269 {offsets = [0, 0], sizes = [2, 1], strides = [1, 1]} : vector<8x128xf32> to vector<2x1xf32>
    %274 = vector.extract_strided_slice %0 {offsets = [1, 0], sizes = [2, 1], strides = [1, 1]} : vector<8x128xf32> to vector<2x1xf32>
    %275 = vector.extract_strided_slice %0 {offsets = [1, 1], sizes = [2, 1], strides = [1, 1]} : vector<8x128xf32> to vector<2x1xf32>
    %276 = vector.extract_strided_slice %0 {offsets = [1, 2], sizes = [2, 1], strides = [1, 1]} : vector<8x128xf32> to vector<2x1xf32>
    %277 = vector.extract_strided_slice %0 {offsets = [1, 3], sizes = [2, 1], strides = [1, 1]} : vector<8x128xf32> to vector<2x1xf32>
    %278 = arith.mulf %270, %274 : vector<2x1xf32>
    %279 = arith.mulf %271, %276 : vector<2x1xf32>
    %280 = arith.subf %278, %279 : vector<2x1xf32>
    %281 = arith.mulf %272, %275 : vector<2x1xf32>
    %282 = arith.addf %280, %281 : vector<2x1xf32>
    %283 = arith.mulf %273, %277 : vector<2x1xf32>
    %284 = arith.subf %282, %283 : vector<2x1xf32>
    %285 = arith.mulf %270, %276 : vector<2x1xf32>
    %286 = arith.mulf %271, %274 : vector<2x1xf32>
    %287 = arith.addf %285, %286 : vector<2x1xf32>
    %288 = arith.mulf %272, %277 : vector<2x1xf32>
    %289 = arith.addf %287, %288 : vector<2x1xf32>
    %290 = arith.mulf %273, %275 : vector<2x1xf32>
    %291 = arith.addf %289, %290 : vector<2x1xf32>
    %292 = vector.extract_strided_slice %3 {offsets = [0, 0], sizes = [2, 1], strides = [1, 1]} : vector<8x1xi32> to vector<2x1xi32>
    %c0_i32_30 = arith.constant 0 : i32
    %293 = vector.broadcast %c0_i32_30 : i32 to vector<2x1xi32>
    %294 = arith.cmpi eq, %292, %293 : vector<2x1xi32>
    %cst_31 = arith.constant 1.000000e+00 : f32
    %cst_32 = arith.constant 2.000000e+00 : f32
    %295 = vector.broadcast %cst_31 : f32 to vector<2x1xf32>
    %296 = vector.broadcast %cst_32 : f32 to vector<2x1xf32>
    %297 = arith.select %294, %295, %296 : vector<2x1xi1>, vector<2x1xf32>
    %298 = vector.broadcast %2 : f32 to vector<2x1xf32>
    %299 = arith.mulf %297, %298 : vector<2x1xf32>
    %c0_i32_33 = arith.constant 0 : i32
    %300 = vector.broadcast %c0_i32_33 : i32 to vector<2x1xi32>
    %301 = arith.cmpi eq, %292, %300 : vector<2x1xi32>
    %cst_34 = arith.constant 0.000000e+00 : f32
    %cst_35 = arith.constant 3.14159274 : f32
    %302 = vector.broadcast %cst_34 : f32 to vector<2x1xf32>
    %303 = vector.broadcast %cst_35 : f32 to vector<2x1xf32>
    %304 = arith.select %301, %302, %303 : vector<2x1xi1>, vector<2x1xf32>
    %305 = arith.addf %299, %304 : vector<2x1xf32>
    %306 = math.cos %305 : vector<2x1xf32>
    %307 = math.sin %305 : vector<2x1xf32>
    %308 = arith.mulf %306, %284 : vector<2x1xf32>
    %309 = arith.mulf %307, %291 : vector<2x1xf32>
    %310 = arith.addf %308, %309 : vector<2x1xf32>
    %311 = arith.mulf %306, %291 : vector<2x1xf32>
    %312 = arith.mulf %307, %284 : vector<2x1xf32>
    %313 = arith.subf %311, %312 : vector<2x1xf32>
    %314 = vector.extract_strided_slice %310 {offsets = [0, 0], sizes = [1, 1], strides = [1, 1]} : vector<2x1xf32> to vector<1x1xf32>
    %315 = vector.extract_strided_slice %313 {offsets = [0, 0], sizes = [1, 1], strides = [1, 1]} : vector<2x1xf32> to vector<1x1xf32>
    %316 = vector.extract_strided_slice %310 {offsets = [1, 0], sizes = [1, 1], strides = [1, 1]} : vector<2x1xf32> to vector<1x1xf32>
    %317 = vector.extract_strided_slice %313 {offsets = [1, 0], sizes = [1, 1], strides = [1, 1]} : vector<2x1xf32> to vector<1x1xf32>
    %cst_36 = arith.constant 2.000000e+00 : f32
    %318 = vector.broadcast %cst_36 : f32 to vector<1x1xf32>
    %319 = arith.mulf %318, %314 : vector<1x1xf32>
    %cst_37 = arith.constant 1.000000e+00 : f32
    %320 = vector.broadcast %cst_37 : f32 to vector<1x1xf32>
    %321 = arith.addf %320, %319 : vector<1x1xf32>
    %322 = arith.addf %321, %316 : vector<1x1xf32>
    %cst_38 = arith.constant 2.000000e+00 : f32
    %323 = vector.broadcast %cst_38 : f32 to vector<1x1xf32>
    %324 = arith.mulf %323, %315 : vector<1x1xf32>
    %325 = arith.addf %324, %317 : vector<1x1xf32>
    %326 = arith.mulf %322, %322 : vector<1x1xf32>
    %327 = arith.mulf %325, %325 : vector<1x1xf32>
    %328 = arith.addf %326, %327 : vector<1x1xf32>
    %cst_39 = arith.constant 1.000000e+00 : f32
    %329 = vector.broadcast %cst_39 : f32 to vector<1x1xf32>
    %330 = arith.addf %328, %329 : vector<1x1xf32>
    %331 = arith.mulf %314, %314 : vector<1x1xf32>
    %332 = arith.mulf %315, %315 : vector<1x1xf32>
    %333 = arith.addf %331, %332 : vector<1x1xf32>
    %cst_40 = arith.constant 2.000000e+00 : f32
    %334 = vector.broadcast %cst_40 : f32 to vector<1x1xf32>
    %335 = arith.mulf %334, %333 : vector<1x1xf32>
    %336 = arith.addf %330, %335 : vector<1x1xf32>
    %337 = arith.mulf %316, %316 : vector<1x1xf32>
    %338 = arith.addf %336, %337 : vector<1x1xf32>
    %339 = arith.mulf %317, %317 : vector<1x1xf32>
    %340 = arith.addf %338, %339 : vector<1x1xf32>
    %cst_41 = arith.constant 5.000000e-02 : f32
    %341 = vector.broadcast %cst_41 : f32 to vector<1x1xf32>
    %342 = arith.mulf %341, %340 : vector<1x1xf32>
    %cst_42 = arith.constant 0.000000e+00 : f32
    %cst_43 = arith.constant 1.000000e+00 : f32
    %343 = vector.broadcast %cst_42 : f32 to vector<1x1xf32>
    %344 = arith.maximumf %343, %342 : vector<1x1xf32>
    %345 = vector.broadcast %cst_43 : f32 to vector<1x1xf32>
    %346 = arith.minimumf %345, %344 : vector<1x1xf32>
    %c0_44 = arith.constant 0 : index
    %c0_45 = arith.constant 0 : index
    %347 = vector.load %arg2[%c0_44, %c0_45] : memref<1x1xf32, #tpu.memory_space<vmem>>, vector<1x1xf32>
    tpu.vector_store %arg2[%c0_44, %c0_45], %346 {strides = array<i32>} : memref<1x1xf32, #tpu.memory_space<vmem>>, vector<1x1xf32>,
    return
  }
}

</mosaic_0001>

<llo_original>
// kernel: qubits2_forward.1
$region0: #{qubits2_forward.1}
  #allocation0 [shape = 'u32[]', space=smem, size = 0x4, offset = 0x4, fixed_abs, tag = 'smem constant byte address 0x4 - core index']
  #allocation1 [shape = 'u32[144,128]{1,0:T(1,128)}', space=vmem, size = 0x12000, scoped, tag = 'internal scratch']
  %s0 = inlined_call_operand.vmem [shape: f32[2], index: 0, kind: input, shape index: {}]
  %s1 = inlined_call_operand.vmem [shape: f32[8,128], index: 1, kind: input, shape index: {}]
  %s2 = inlined_call_operand.hbm [shape: f32[1,1], index: 2, kind: output, shape index: {}]
  %s3 = sld [smem:[#allocation0]]
  $region22: #{qubits2_forward.1} parent=0
    _
  %s5 = ssub.s32 1, %s3
  %s6 = scalar_select 0, %s5, %s3
  $region1: #{qubits2_forward.1} parent=0
    #allocation2 [shape = 'u8[512]{0}', space=smem, size = 0x200, scoped, tag = 'input window, operand 0, single buffered']
    #allocation3 [shape = 's32[1]{0}', space=sflag, size = 0x4, scoped, tag = 'scoped memory for qubits2_forward.1']
    #allocation4 [shape = 's32[1]{0}', space=sflag, size = 0x4, scoped, tag = 'scoped memory for qubits2_forward.1']
    #allocation5 [shape = 'u8[512]{0}', space=vmem, size = 0x400, scoped, tag = 'output window, operand 0, single buffered']
    %7 = vsyncpa [#allocation4], 0
    %8 = vsyncpa [#allocation3], 0
    // Predicated region
    $region2: #{qubits2_forward.1} parent=1 // pred_check
      _
    $region3: #{qubits2_forward.1} parent=1 // pred_check_branch
      %10 = sbr.rel (0) target = $region5
    $region4: #{qubits2_forward.1} parent=1 // pred_region
      %s12 = ssub.s32 16, 16
      %13 = vsyncadd [#allocation4], %s12
      %s15 = sshll.u32 %s0, 4
      %s16 = int_to_ptr.vmem [resolvable:$true] %s15
      %18 = dma.vmem_to_smem %s16, 16, [#allocation2], [#allocation4]
    $region5: #{qubits2_forward.1} parent=1 // pred_fallthru
      _
    // Predicated region
    $region6: #{qubits2_forward.1} parent=1 // pred_check
      _
    $region7: #{qubits2_forward.1} parent=1 // pred_check_branch
      %20 = sbr.rel (0) target = $region9
    $region8: #{qubits2_forward.1} parent=1 // pred_region
      _
    $region9: #{qubits2_forward.1} parent=1 // pred_fallthru
      _
    // Predicated region
    $region10: #{qubits2_forward.1} parent=1 // pred_check
      _
    $region11: #{qubits2_forward.1} parent=1 // pred_check_branch
      %22 = sbr.rel (0) target = $region13
    $region12: #{qubits2_forward.1} parent=1 // pred_region
      %23 = dma.done [#allocation4], 16
    $region13: #{qubits2_forward.1} parent=1 // pred_fallthru
      _
    %24 = sfence
    %v25 = vld [vmem:[%s1] sm:$0xff]
    %s26 = sld [smem:[#allocation2]]
    %s27 = sld [smem:[#allocation2 + $0x1]]
    %v28 = vlaneseq
    %v29 = vshrl.u32 %v28, 7
    %vm30 = vcmp.eq.s32.totalorder %v29, 0
    %vm31 = vcmp.eq.s32.totalorder %v29, 1
    %v32 = vsel %vm31, 0.0071424926, 0.0
    %v33 = vsel %vm30, 0.005050505, %v32
    %v34 = vstv %s26
    %v35 = vmul.f32 %v33, %v34
    %v36 = vand.u32 2147483647, %v35
    %vm37 = vcmp.le.f32.partialorder %v36, 0.7853982
    %vm38 = vcmp.lt.s32.totalorder %v35, 0
    %v39 = vand.u32 %v35, 2139095040
    %v40 = vshrl.u32 %v39, 23
    %v41 = vsub.s32 %v40, 127
    %v42 = vand.u32 2147483647, %v35
    %v43 = vand.u32 %v42, 8388607
    %v44 = vor.u32 %v43, 8388608
    %v45 = vsub.s32 0, %v44
    %v46 = vadd.s32 %v41, 1
    %vm47 = vcmp.gt.s32.totalorder %v46, 0
    %v48 = vsel %vm47, %v46, 0
    %v49 = vshrl.u32 %v48, 5
    %v50 = vand.u32 %v48, 31
    %v51 = vsub.s32 32, %v50
    %v52 = vshrl.u32 683565275, %v51
    %v53 = vshll.u32 683565275, %v50
    %v54 = vshrl.u32 2475754826, %v51
    %v55 = vor.u32 %v53, %v54
    %v56 = vshll.u32 2475754826, %v50
    %v57 = vshrl.u32 2131351028, %v51
    %v58 = vor.u32 %v56, %v57
    %v59 = vshll.u32 2131351028, %v50
    %v60 = vshrl.u32 2102212464, %v51
    %v61 = vor.u32 %v59, %v60
    %v62 = vshll.u32 2102212464, %v50
    %v63 = vshrl.u32 920167782, %v51
    %v64 = vor.u32 %v62, %v63
    %v65 = vshll.u32 920167782, %v50
    %v66 = vshrl.u32 1326507024, %v51
    %v67 = vor.u32 %v65, %v66
    %vm68 = vcmp.lt.s32.totalorder %v49, 1
    %vm69 = vcmp.lt.s32.totalorder %v49, 2
    %vm70 = vcmp.lt.s32.totalorder %v49, 3
    %vm71 = vcmp.lt.s32.totalorder %v49, 4
    %v72 = vsel %vm68, %v52, %v55
    %v73 = vsel %vm71, %v61, 2102212464
    %v74 = vsel %vm70, %v58, %v73
    %v75 = vsel %vm69, %v72, %v74
    %v76 = vsel %vm68, %v55, %v58
    %v77 = vsel %vm71, %v64, 920167782
    %v78 = vsel %vm70, %v61, %v77
    %v79 = vsel %vm69, %v76, %v78
    %v80 = vsel %vm68, %v58, %v61
    %v81 = vsel %vm71, %v67, 1326507024
    %v82 = vsel %vm70, %v64, %v81
    %v83 = vsel %vm69, %v80, %v82
    %v84 = vshll.u32 %v44, 8
    %v85 = vmul.u32.u64.compose %v84, %v83
    %v86 = vextract.low.u32 %v85
    %v87 = vextract.high.u32 %v85
    %v88 = vmul.u32.u64.compose %v84, %v79
    %v89 = vextract.low.u32 %v88
    %v90 = vextract.high.u32 %v88
    %v91 = vmul.u32 %v84, %v75
    %v92 = vadd.s32 %v87, %v89
    %vm93 = vc.u32 %v87, %v89
    %v94 = vadd.s32 %v90, 1
    %v95 = vsel %vm93, %v94, %v90
    %v96 = vadd.s32 %v91, %v95
    %v97 = vadd.s32 %v96, 536870912
    %v98 = vshrl.u32 %v97, 30
    %v99 = vshll.u32 %v98, 30
    %v100 = vsub.s32 %v96, %v99
    %vm101 = vcmp.lt.s32.totalorder %v100, 0
    %v102 = vsub.s32 0, %v100
    %v103 = vsel %vm101, %v102, %v100
    %v104 = vclz %v103
    %v105 = vsub.s32 %v104, 2
    %vm106 = vcmp.gt.s32.totalorder 0, %v105
    %v107 = vsel %vm106, 0, %v105
    %v108 = vsub.s32 32, %v107
    %v109 = vshll.u32 %v100, %v107
    %v110 = vshrl.u32 %v92, %v108
    %v111 = vor.u32 %v109, %v110
    %v112 = vsub.s32 4294967266, %v107
    %v113 = vadd.s32 %v112, 127
    %v114 = vshll.u32 %v113, 23
    %v115 = vor.u32 4788187, %v114
    %v116 = vand.u32 2147483647, %v115
    %v118 = vcvt.s32.f32 %v111
    %v119 = vmul.f32 %v118, %v116
    %v120 = vxor.u32 %v119, 2147483648
    %v121 = vsel %vm38, %v120, %v119
    %v122 = vsub.s32 4, %v98
    %v123 = vsel %vm38, %v122, %v98
    %v124 = vsel %vm37, %v35, %v121
    %v125 = vsel %vm37, 0, %v123
    %v126 = vcosq.f32.pop %v124
    %v127 = vsinq.f32.pop %v124
    %vm128 = vweird.f32 %v35
    %v129 = vand.u32 %v125, 3
    %vm130 = vcmp.lt.s32.totalorder %v129, 2
    %vm131 = vcmp.eq.s32.totalorder %v129, 0
    %v132 = vxor.u32 %v127, 2147483648
    %v133 = vsel %vm131, %v126, %v132
    %vm134 = vcmp.eq.s32.totalorder %v129, 2
    %v135 = vxor.u32 %v126, 2147483648
    %v136 = vsel %vm134, %v135, %v127
    %v137 = vsel %vm130, %v133, %v136
    %v138 = vsel %vm128, nan, %v137
    %v139 = vand.u32 2147483647, %v35
    %vm140 = vcmp.le.f32.partialorder %v139, 0.7853982
    %vm141 = vcmp.lt.s32.totalorder %v35, 0
    %v142 = vand.u32 %v35, 2139095040
    %v143 = vshrl.u32 %v142, 23
    %v144 = vsub.s32 %v143, 127
    %v145 = vand.u32 2147483647, %v35
    %v146 = vand.u32 %v145, 8388607
    %v147 = vor.u32 %v146, 8388608
    %v148 = vsub.s32 0, %v147
    %v149 = vadd.s32 %v144, 1
    %vm150 = vcmp.gt.s32.totalorder %v149, 0
    %v151 = vsel %vm150, %v149, 0
    %v152 = vshrl.u32 %v151, 5
    %v153 = vand.u32 %v151, 31
    %v154 = vsub.s32 32, %v153
    %v155 = vshrl.u32 683565275, %v154
    %v156 = vshll.u32 683565275, %v153
    %v157 = vshrl.u32 2475754826, %v154
    %v158 = vor.u32 %v156, %v157
    %v159 = vshll.u32 2475754826, %v153
    %v160 = vshrl.u32 2131351028, %v154
    %v161 = vor.u32 %v159, %v160
    %v162 = vshll.u32 2131351028, %v153
    %v163 = vshrl.u32 2102212464, %v154
    %v164 = vor.u32 %v162, %v163
    %v165 = vshll.u32 2102212464, %v153
    %v166 = vshrl.u32 920167782, %v154
    %v167 = vor.u32 %v165, %v166
    %v168 = vshll.u32 920167782, %v153
    %v169 = vshrl.u32 1326507024, %v154
    %v170 = vor.u32 %v168, %v169
    %vm171 = vcmp.lt.s32.totalorder %v152, 1
    %vm172 = vcmp.lt.s32.totalorder %v152, 2
    %vm173 = vcmp.lt.s32.totalorder %v152, 3
    %vm174 = vcmp.lt.s32.totalorder %v152, 4
    %v175 = vsel %vm171, %v155, %v158
    %v176 = vsel %vm174, %v164, 2102212464
    %v177 = vsel %vm173, %v161, %v176
    %v178 = vsel %vm172, %v175, %v177
    %v179 = vsel %vm171, %v158, %v161
    %v180 = vsel %vm174, %v167, 920167782
    %v181 = vsel %vm173, %v164, %v180
    %v182 = vsel %vm172, %v179, %v181
    %v183 = vsel %vm171, %v161, %v164
    %v184 = vsel %vm174, %v170, 1326507024
    %v185 = vsel %vm173, %v167, %v184
    %v186 = vsel %vm172, %v183, %v185
    %v187 = vshll.u32 %v147, 8
    %v188 = vmul.u32.u64.compose %v187, %v186
    %v189 = vextract.low.u32 %v188
    %v190 = vextract.high.u32 %v188
    %v191 = vmul.u32.u64.compose %v187, %v182
    %v192 = vextract.low.u32 %v191
    %v193 = vextract.high.u32 %v191
    %v194 = vmul.u32 %v187, %v178
    %v195 = vadd.s32 %v190, %v192
    %vm196 = vc.u32 %v190, %v192
    %v197 = vadd.s32 %v193, 1
    %v198 = vsel %vm196, %v197, %v193
    %v199 = vadd.s32 %v194, %v198
    %v200 = vadd.s32 %v199, 536870912
    %v201 = vshrl.u32 %v200, 30
    %v202 = vshll.u32 %v201, 30
    %v203 = vsub.s32 %v199, %v202
    %vm204 = vcmp.lt.s32.totalorder %v203, 0
    %v205 = vsub.s32 0, %v203
    %v206 = vsel %vm204, %v205, %v203
    %v207 = vclz %v206
    %v208 = vsub.s32 %v207, 2
    %vm209 = vcmp.gt.s32.totalorder 0, %v208
    %v210 = vsel %vm209, 0, %v208
    %v211 = vsub.s32 32, %v210
    %v212 = vshll.u32 %v203, %v210
    %v213 = vshrl.u32 %v195, %v211
    %v214 = vor.u32 %v212, %v213
    %v215 = vsub.s32 4294967266, %v210
    %v216 = vadd.s32 %v215, 127
    %v217 = vshll.u32 %v216, 23
    %v218 = vor.u32 4788187, %v217
    %v219 = vand.u32 2147483647, %v218
    %v221 = vcvt.s32.f32 %v214
    %v222 = vmul.f32 %v221, %v219
    %v223 = vxor.u32 %v222, 2147483648
    %v224 = vsel %vm141, %v223, %v222
    %v225 = vsub.s32 4, %v201
    %v226 = vsel %vm141, %v225, %v201
    %v227 = vsel %vm140, %v35, %v224
    %v228 = vsel %vm140, 0, %v226
    %v229 = vcosq.f32.pop %v227
    %v230 = vsinq.f32.pop %v227
    %vm231 = vweird.f32 %v35
    %v232 = vadd.s32 %v228, 3
    %v233 = vand.u32 %v232, 3
    %vm234 = vcmp.lt.s32.totalorder %v233, 2
    %vm235 = vcmp.eq.s32.totalorder %v233, 0
    %v236 = vxor.u32 %v230, 2147483648
    %v237 = vsel %vm235, %v229, %v236
    %vm238 = vcmp.eq.s32.totalorder %v233, 2
    %v239 = vxor.u32 %v229, 2147483648
    %v240 = vsel %vm238, %v239, %v230
    %v241 = vsel %vm234, %v237, %v240
    %v242 = vsel %vm231, nan, %v241
    %v243 = vand.u32 2147483647, %v25
    %vm244 = vcmp.le.f32.partialorder %v243, 0.7853982
    %vm245 = vcmp.lt.s32.totalorder %v25, 0
    %v246 = vand.u32 %v25, 2139095040
    %v247 = vshrl.u32 %v246, 23
    %v248 = vsub.s32 %v247, 127
    %v249 = vand.u32 2147483647, %v25
    %v250 = vand.u32 %v249, 8388607
    %v251 = vor.u32 %v250, 8388608
    %v252 = vsub.s32 0, %v251
    %v253 = vadd.s32 %v248, 1
    %vm254 = vcmp.gt.s32.totalorder %v253, 0
    %v255 = vsel %vm254, %v253, 0
    %v256 = vshrl.u32 %v255, 5
    %v257 = vand.u32 %v255, 31
    %v258 = vsub.s32 32, %v257
    %v259 = vshrl.u32 683565275, %v258
    %v260 = vshll.u32 683565275, %v257
    %v261 = vshrl.u32 2475754826, %v258
    %v262 = vor.u32 %v260, %v261
    %v263 = vshll.u32 2475754826, %v257
    %v264 = vshrl.u32 2131351028, %v258
    %v265 = vor.u32 %v263, %v264
    %v266 = vshll.u32 2131351028, %v257
    %v267 = vshrl.u32 2102212464, %v258
    %v268 = vor.u32 %v266, %v267
    %v269 = vshll.u32 2102212464, %v257
    %v270 = vshrl.u32 920167782, %v258
    %v271 = vor.u32 %v269, %v270
    %v272 = vshll.u32 920167782, %v257
    %v273 = vshrl.u32 1326507024, %v258
    %v274 = vor.u32 %v272, %v273
    %vm275 = vcmp.lt.s32.totalorder %v256, 1
    %vm276 = vcmp.lt.s32.totalorder %v256, 2
    %vm277 = vcmp.lt.s32.totalorder %v256, 3
    %vm278 = vcmp.lt.s32.totalorder %v256, 4
    %v279 = vsel %vm275, %v259, %v262
    %v280 = vsel %vm278, %v268, 2102212464
    %v281 = vsel %vm277, %v265, %v280
    %v282 = vsel %vm276, %v279, %v281
    %v283 = vsel %vm275, %v262, %v265
    %v284 = vsel %vm278, %v271, 920167782
    %v285 = vsel %vm277, %v268, %v284
    %v286 = vsel %vm276, %v283, %v285
    %v287 = vsel %vm275, %v265, %v268
    %v288 = vsel %vm278, %v274, 1326507024
    %v289 = vsel %vm277, %v271, %v288
    %v290 = vsel %vm276, %v287, %v289
    %v291 = vshll.u32 %v251, 8
    %v292 = vmul.u32.u64.compose %v291, %v290
    %v293 = vextract.low.u32 %v292
    %v294 = vextract.high.u32 %v292
    %v295 = vmul.u32.u64.compose %v291, %v286
    %v296 = vextract.low.u32 %v295
    %v297 = vextract.high.u32 %v295
    %v298 = vmul.u32 %v291, %v282
    %v299 = vadd.s32 %v294, %v296
    %vm300 = vc.u32 %v294, %v296
    %v301 = vadd.s32 %v297, 1
    %v302 = vsel %vm300, %v301, %v297
    %v303 = vadd.s32 %v298, %v302
    %v304 = vadd.s32 %v303, 536870912
    %v305 = vshrl.u32 %v304, 30
    %v306 = vshll.u32 %v305, 30
    %v307 = vsub.s32 %v303, %v306
    %vm308 = vcmp.lt.s32.totalorder %v307, 0
    %v309 = vsub.s32 0, %v307
    %v310 = vsel %vm308, %v309, %v307
    %v311 = vclz %v310
    %v312 = vsub.s32 %v311, 2
    %vm313 = vcmp.gt.s32.totalorder 0, %v312
    %v314 = vsel %vm313, 0, %v312
    %v315 = vsub.s32 32, %v314
    %v316 = vshll.u32 %v307, %v314
    %v317 = vshrl.u32 %v299, %v315
    %v318 = vor.u32 %v316, %v317
    %v319 = vsub.s32 4294967266, %v314
    %v320 = vadd.s32 %v319, 127
    %v321 = vshll.u32 %v320, 23
    %v322 = vor.u32 4788187, %v321
    %v323 = vand.u32 2147483647, %v322
    %v325 = vcvt.s32.f32 %v318
    %v326 = vmul.f32 %v325, %v323
    %v327 = vxor.u32 %v326, 2147483648
    %v328 = vsel %vm245, %v327, %v326
    %v329 = vsub.s32 4, %v305
    %v330 = vsel %vm245, %v329, %v305
    %v331 = vsel %vm244, %v25, %v328
    %v332 = vsel %vm244, 0, %v330
    %v333 = vcosq.f32.pop %v331
    %v334 = vsinq.f32.pop %v331
    %vm335 = vweird.f32 %v25
    %v336 = vand.u32 %v332, 3
    %vm337 = vcmp.lt.s32.totalorder %v336, 2
    %vm338 = vcmp.eq.s32.totalorder %v336, 0
    %v339 = vxor.u32 %v334, 2147483648
    %v340 = vsel %vm338, %v333, %v339
    %vm341 = vcmp.eq.s32.totalorder %v336, 2
    %v342 = vxor.u32 %v333, 2147483648
    %v343 = vsel %vm341, %v342, %v334
    %v344 = vsel %vm337, %v340, %v343
    %v345 = vsel %vm335, nan, %v344
    %v346 = vand.u32 2147483647, %v25
    %vm347 = vcmp.le.f32.partialorder %v346, 0.7853982
    %vm348 = vcmp.lt.s32.totalorder %v25, 0
    %v349 = vand.u32 %v25, 2139095040
    %v350 = vshrl.u32 %v349, 23
    %v351 = vsub.s32 %v350, 127
    %v352 = vand.u32 2147483647, %v25
    %v353 = vand.u32 %v352, 8388607
    %v354 = vor.u32 %v353, 8388608
    %v355 = vsub.s32 0, %v354
    %v356 = vadd.s32 %v351, 1
    %vm357 = vcmp.gt.s32.totalorder %v356, 0
    %v358 = vsel %vm357, %v356, 0
    %v359 = vshrl.u32 %v358, 5
    %v360 = vand.u32 %v358, 31
    %v361 = vsub.s32 32, %v360
    %v362 = vshrl.u32 683565275, %v361
    %v363 = vshll.u32 683565275, %v360
    %v364 = vshrl.u32 2475754826, %v361
    %v365 = vor.u32 %v363, %v364
    %v366 = vshll.u32 2475754826, %v360
    %v367 = vshrl.u32 2131351028, %v361
    %v368 = vor.u32 %v366, %v367
    %v369 = vshll.u32 2131351028, %v360
    %v370 = vshrl.u32 2102212464, %v361
    %v371 = vor.u32 %v369, %v370
    %v372 = vshll.u32 2102212464, %v360
    %v373 = vshrl.u32 920167782, %v361
    %v374 = vor.u32 %v372, %v373
    %v375 = vshll.u32 920167782, %v360
    %v376 = vshrl.u32 1326507024, %v361
    %v377 = vor.u32 %v375, %v376
    %vm378 = vcmp.lt.s32.totalorder %v359, 1
    %vm379 = vcmp.lt.s32.totalorder %v359, 2
    %vm380 = vcmp.lt.s32.totalorder %v359, 3
    %vm381 = vcmp.lt.s32.totalorder %v359, 4
    %v382 = vsel %vm378, %v362, %v365
    %v383 = vsel %vm381, %v371, 2102212464
    %v384 = vsel %vm380, %v368, %v383
    %v385 = vsel %vm379, %v382, %v384
    %v386 = vsel %vm378, %v365, %v368
    %v387 = vsel %vm381, %v374, 920167782
    %v388 = vsel %vm380, %v371, %v387
    %v389 = vsel %vm379, %v386, %v388
    %v390 = vsel %vm378, %v368, %v371
    %v391 = vsel %vm381, %v377, 1326507024
    %v392 = vsel %vm380, %v374, %v391
    %v393 = vsel %vm379, %v390, %v392
    %v394 = vshll.u32 %v354, 8
    %v395 = vmul.u32.u64.compose %v394, %v393
    %v396 = vextract.low.u32 %v395
    %v397 = vextract.high.u32 %v395
    %v398 = vmul.u32.u64.compose %v394, %v389
    %v399 = vextract.low.u32 %v398
    %v400 = vextract.high.u32 %v398
    %v401 = vmul.u32 %v394, %v385
    %v402 = vadd.s32 %v397, %v399
    %vm403 = vc.u32 %v397, %v399
    %v404 = vadd.s32 %v400, 1
    %v405 = vsel %vm403, %v404, %v400
    %v406 = vadd.s32 %v401, %v405
    %v407 = vadd.s32 %v406, 536870912
    %v408 = vshrl.u32 %v407, 30
    %v409 = vshll.u32 %v408, 30
    %v410 = vsub.s32 %v406, %v409
    %vm411 = vcmp.lt.s32.totalorder %v410, 0
    %v412 = vsub.s32 0, %v410
    %v413 = vsel %vm411, %v412, %v410
    %v414 = vclz %v413
    %v415 = vsub.s32 %v414, 2
    %vm416 = vcmp.gt.s32.totalorder 0, %v415
    %v417 = vsel %vm416, 0, %v415
    %v418 = vsub.s32 32, %v417
    %v419 = vshll.u32 %v410, %v417
    %v420 = vshrl.u32 %v402, %v418
    %v421 = vor.u32 %v419, %v420
    %v422 = vsub.s32 4294967266, %v417
    %v423 = vadd.s32 %v422, 127
    %v424 = vshll.u32 %v423, 23
    %v425 = vor.u32 4788187, %v424
    %v426 = vand.u32 2147483647, %v425
    %v428 = vcvt.s32.f32 %v421
    %v429 = vmul.f32 %v428, %v426
    %v430 = vxor.u32 %v429, 2147483648
    %v431 = vsel %vm348, %v430, %v429
    %v432 = vsub.s32 4, %v408
    %v433 = vsel %vm348, %v432, %v408
    %v434 = vsel %vm347, %v25, %v431
    %v435 = vsel %vm347, 0, %v433
    %v436 = vcosq.f32.pop %v434
    %v437 = vsinq.f32.pop %v434
    %vm438 = vweird.f32 %v25
    %v439 = vadd.s32 %v435, 3
    %v440 = vand.u32 %v439, 3
    %vm441 = vcmp.lt.s32.totalorder %v440, 2
    %vm442 = vcmp.eq.s32.totalorder %v440, 0
    %v443 = vxor.u32 %v437, 2147483648
    %v444 = vsel %vm442, %v436, %v443
    %vm445 = vcmp.eq.s32.totalorder %v440, 2
    %v446 = vxor.u32 %v436, 2147483648
    %v447 = vsel %vm445, %v446, %v437
    %v448 = vsel %vm441, %v444, %v447
    %v449 = vsel %vm438, nan, %v448
    %v450 = vlaneseq
    %v451 = vand.u32 %v450, 127
    %vm452 = vcmp.lt.s32.totalorder %v451, 99
    %v453 = vsel %vm452, 1, 0
    %vm454 = vcmp.eq.s32.totalorder %v453, 1
    %v455 = vsel %vm454, %v138, 1.0
    %v456 = vlaneseq
    %v457 = vshrl.u32 %v456, 7
    %v458 = vsub.s32 0, %v457
    %v459 = vrot.slane %v449, %v458
    %v460 = vmul.f32 %v242, %v459
    %v461 = vsel %vm454, %v460, 0.0
    %v462 = vlaneseq
    %v463 = vshrl.u32 %v462, 7
    %v464 = vsub.s32 0, %v463
    %v465 = vrot.slane %v345, %v464
    %v466 = vmul.f32 %v242, %v465
    %v467 = vsub.f32 0.0, %v466
    %v468 = vsel %vm454, %v467, 0.0
    %469 = vrot.lane.b32.xlu0 %v455, 127
    %v470 = vpop.permute.xlu0 %469
    %471 = vrot.lane.b32.xlu0 0.0, 127
    %v472 = vpop.permute.xlu0 %471
    %473 = vrot.lane.b32.xlu0 %v461, 127
    %v474 = vpop.permute.xlu0 %473
    %475 = vrot.lane.b32.xlu0 %v468, 127
    %v476 = vpop.permute.xlu0 %475
    %v477 = vmul.f32 %v470, %v455
    %v478 = vmul.f32 %v472, 0.0
    %v479 = vsub.f32 %v477, %v478
    %v480 = vmul.f32 %v474, %v461
    %v481 = vsub.f32 %v479, %v480
    %v482 = vmul.f32 %v476, %v468
    %v483 = vsub.f32 %v481, %v482
    %v484 = vmul.f32 %v470, 0.0
    %v485 = vmul.f32 %v472, %v455
    %v486 = vadd.f32 %v484, %v485
    %v487 = vmul.f32 %v476, %v461
    %v488 = vsub.f32 %v486, %v487
    %v489 = vmul.f32 %v474, %v468
    %v490 = vadd.f32 %v488, %v489
    %v491 = vmul.f32 %v470, %v461
    %v492 = vmul.f32 %v472, %v468
    %v493 = vsub.f32 %v491, %v492
    %v494 = vmul.f32 %v474, %v455
    %v495 = vadd.f32 %v493, %v494
    %v496 = vmul.f32 %v476, 0.0
    %v497 = vadd.f32 %v495, %v496
    %v498 = vmul.f32 %v470, %v468
    %v499 = vmul.f32 %v472, %v461
    %v500 = vadd.f32 %v498, %v499
    %v501 = vmul.f32 %v476, %v455
    %v502 = vadd.f32 %v500, %v501
    %v503 = vmul.f32 %v474, 0.0
    %v504 = vsub.f32 %v502, %v503
    %505 = vrot.lane.b32.xlu0 %v483, 126
    %v506 = vpop.permute.xlu0 %505
    %507 = vrot.lane.b32.xlu0 %v490, 126
    %v508 = vpop.permute.xlu0 %507
    %509 = vrot.lane.b32.xlu0 %v497, 126
    %v510 = vpop.permute.xlu0 %509
    %511 = vrot.lane.b32.xlu0 %v504, 126
    %v512 = vpop.permute.xlu0 %511
    %v513 = vmul.f32 %v506, %v483
    %v514 = vmul.f32 %v508, %v490
    %v515 = vsub.f32 %v513, %v514
    %v516 = vmul.f32 %v510, %v497
    %v517 = vsub.f32 %v515, %v516
    %v518 = vmul.f32 %v512, %v504
    %v519 = vsub.f32 %v517, %v518
    %v520 = vmul.f32 %v506, %v490
    %v521 = vmul.f32 %v508, %v483
    %v522 = vadd.f32 %v520, %v521
    %v523 = vmul.f32 %v512, %v497
    %v524 = vsub.f32 %v522, %v523
    %v525 = vmul.f32 %v510, %v504
    %v526 = vadd.f32 %v524, %v525
    %v527 = vmul.f32 %v506, %v497
    %v528 = vmul.f32 %v508, %v504
    %v529 = vsub.f32 %v527, %v528
    %v530 = vmul.f32 %v510, %v483
    %v531 = vadd.f32 %v529, %v530
    %v532 = vmul.f32 %v512, %v490
    %v533 = vadd.f32 %v531, %v532
    %v534 = vmul.f32 %v506, %v504
    %v535 = vmul.f32 %v508, %v497
    %v536 = vadd.f32 %v534, %v535
    %v537 = vmul.f32 %v512, %v483
    %v538 = vadd.f32 %v536, %v537
    %v539 = vmul.f32 %v510, %v490
    %v540 = vsub.f32 %v538, %v539
    %541 = vrot.lane.b32.xlu0 %v519, 124
    %v542 = vpop.permute.xlu0 %541
    %543 = vrot.lane.b32.xlu0 %v526, 124
    %v544 = vpop.permute.xlu0 %543
    %545 = vrot.lane.b32.xlu0 %v533, 124
    %v546 = vpop.permute.xlu0 %545
    %547 = vrot.lane.b32.xlu0 %v540, 124
    %v548 = vpop.permute.xlu0 %547
    %v549 = vmul.f32 %v542, %v519
    %v550 = vmul.f32 %v544, %v526
    %v551 = vsub.f32 %v549, %v550
    %v552 = vmul.f32 %v546, %v533
    %v553 = vsub.f32 %v551, %v552
    %v554 = vmul.f32 %v548, %v540
    %v555 = vsub.f32 %v553, %v554
    %v556 = vmul.f32 %v542, %v526
    %v557 = vmul.f32 %v544, %v519
    %v558 = vadd.f32 %v556, %v557
    %v559 = vmul.f32 %v548, %v533
    %v560 = vsub.f32 %v558, %v559
    %v561 = vmul.f32 %v546, %v540
    %v562 = vadd.f32 %v560, %v561
    %v563 = vmul.f32 %v542, %v533
    %v564 = vmul.f32 %v544, %v540
    %v565 = vsub.f32 %v563, %v564
    %v566 = vmul.f32 %v546, %v519
    %v567 = vadd.f32 %v565, %v566
    %v568 = vmul.f32 %v548, %v526
    %v569 = vadd.f32 %v567, %v568
    %v570 = vmul.f32 %v542, %v540
    %v571 = vmul.f32 %v544, %v533
    %v572 = vadd.f32 %v570, %v571
    %v573 = vmul.f32 %v548, %v519
    %v574 = vadd.f32 %v572, %v573
    %v575 = vmul.f32 %v546, %v526
    %v576 = vsub.f32 %v574, %v575
    %577 = vrot.lane.b32.xlu0 %v555, 120
    %v578 = vpop.permute.xlu0 %577
    %579 = vrot.lane.b32.xlu0 %v562, 120
    %v580 = vpop.permute.xlu0 %579
    %581 = vrot.lane.b32.xlu0 %v569, 120
    %v582 = vpop.permute.xlu0 %581
    %583 = vrot.lane.b32.xlu0 %v576, 120
    %v584 = vpop.permute.xlu0 %583
    %v585 = vmul.f32 %v578, %v555
    %v586 = vmul.f32 %v580, %v562
    %v587 = vsub.f32 %v585, %v586
    %v588 = vmul.f32 %v582, %v569
    %v589 = vsub.f32 %v587, %v588
    %v590 = vmul.f32 %v584, %v576
    %v591 = vsub.f32 %v589, %v590
    %v592 = vmul.f32 %v578, %v562
    %v593 = vmul.f32 %v580, %v555
    %v594 = vadd.f32 %v592, %v593
    %v595 = vmul.f32 %v584, %v569
    %v596 = vsub.f32 %v594, %v595
    %v597 = vmul.f32 %v582, %v576
    %v598 = vadd.f32 %v596, %v597
    %v599 = vmul.f32 %v578, %v569
    %v600 = vmul.f32 %v580, %v576
    %v601 = vsub.f32 %v599, %v600
    %v602 = vmul.f32 %v582, %v555
    %v603 = vadd.f32 %v601, %v602
    %v604 = vmul.f32 %v584, %v562
    %v605 = vadd.f32 %v603, %v604
    %v606 = vmul.f32 %v578, %v576
    %v607 = vmul.f32 %v580, %v569
    %v608 = vadd.f32 %v606, %v607
    %v609 = vmul.f32 %v584, %v555
    %v610 = vadd.f32 %v608, %v609
    %v611 = vmul.f32 %v582, %v562
    %v612 = vsub.f32 %v610, %v611
    %613 = vrot.lane.b32.xlu0 %v591, 112
    %v614 = vpop.permute.xlu0 %613
    %615 = vrot.lane.b32.xlu0 %v598, 112
    %v616 = vpop.permute.xlu0 %615
    %617 = vrot.lane.b32.xlu0 %v605, 112
    %v618 = vpop.permute.xlu0 %617
    %619 = vrot.lane.b32.xlu0 %v612, 112
    %v620 = vpop.permute.xlu0 %619
    %v621 = vmul.f32 %v614, %v591
    %v622 = vmul.f32 %v616, %v598
    %v623 = vsub.f32 %v621, %v622
    %v624 = vmul.f32 %v618, %v605
    %v625 = vsub.f32 %v623, %v624
    %v626 = vmul.f32 %v620, %v612
    %v627 = vsub.f32 %v625, %v626
    %v628 = vmul.f32 %v614, %v598
    %v629 = vmul.f32 %v616, %v591
    %v630 = vadd.f32 %v628, %v629
    %v631 = vmul.f32 %v620, %v605
    %v632 = vsub.f32 %v630, %v631
    %v633 = vmul.f32 %v618, %v612
    %v634 = vadd.f32 %v632, %v633
    %v635 = vmul.f32 %v614, %v605
    %v636 = vmul.f32 %v616, %v612
    %v637 = vsub.f32 %v635, %v636
    %v638 = vmul.f32 %v618, %v591
    %v639 = vadd.f32 %v637, %v638
    %v640 = vmul.f32 %v620, %v598
    %v641 = vadd.f32 %v639, %v640
    %v642 = vmul.f32 %v614, %v612
    %v643 = vmul.f32 %v616, %v605
    %v644 = vadd.f32 %v642, %v643
    %v645 = vmul.f32 %v620, %v591
    %v646 = vadd.f32 %v644, %v645
    %v647 = vmul.f32 %v618, %v598
    %v648 = vsub.f32 %v646, %v647
    %649 = vrot.lane.b32.xlu0 %v627, 96
    %v650 = vpop.permute.xlu0 %649
    %651 = vrot.lane.b32.xlu0 %v634, 96
    %v652 = vpop.permute.xlu0 %651
    %653 = vrot.lane.b32.xlu0 %v641, 96
    %v654 = vpop.permute.xlu0 %653
    %655 = vrot.lane.b32.xlu0 %v648, 96
    %v656 = vpop.permute.xlu0 %655
    %v657 = vmul.f32 %v650, %v627
    %v658 = vmul.f32 %v652, %v634
    %v659 = vsub.f32 %v657, %v658
    %v660 = vmul.f32 %v654, %v641
    %v661 = vsub.f32 %v659, %v660
    %v662 = vmul.f32 %v656, %v648
    %v663 = vsub.f32 %v661, %v662
    %v664 = vmul.f32 %v650, %v634
    %v665 = vmul.f32 %v652, %v627
    %v666 = vadd.f32 %v664, %v665
    %v667 = vmul.f32 %v656, %v641
    %v668 = vsub.f32 %v666, %v667
    %v669 = vmul.f32 %v654, %v648
    %v670 = vadd.f32 %v668, %v669
    %v671 = vmul.f32 %v650, %v641
    %v672 = vmul.f32 %v652, %v648
    %v673 = vsub.f32 %v671, %v672
    %v674 = vmul.f32 %v654, %v627
    %v675 = vadd.f32 %v673, %v674
    %v676 = vmul.f32 %v656, %v634
    %v677 = vadd.f32 %v675, %v676
    %v678 = vmul.f32 %v650, %v648
    %v679 = vmul.f32 %v652, %v641
    %v680 = vadd.f32 %v678, %v679
    %v681 = vmul.f32 %v656, %v627
    %v682 = vadd.f32 %v680, %v681
    %v683 = vmul.f32 %v654, %v634
    %v684 = vsub.f32 %v682, %v683
    %685 = vrot.lane.b32.xlu0 %v663, 64
    %v686 = vpop.permute.xlu0 %685
    %687 = vrot.lane.b32.xlu0 %v670, 64
    %v688 = vpop.permute.xlu0 %687
    %689 = vrot.lane.b32.xlu0 %v677, 64
    %v690 = vpop.permute.xlu0 %689
    %691 = vrot.lane.b32.xlu0 %v684, 64
    %v692 = vpop.permute.xlu0 %691
    %v693 = vmul.f32 %v686, %v663
    %v694 = vmul.f32 %v688, %v670
    %v695 = vsub.f32 %v693, %v694
    %v696 = vmul.f32 %v690, %v677
    %v697 = vsub.f32 %v695, %v696
    %v698 = vmul.f32 %v692, %v684
    %v699 = vsub.f32 %v697, %v698
    %v700 = vmul.f32 %v686, %v670
    %v701 = vmul.f32 %v688, %v663
    %v702 = vadd.f32 %v700, %v701
    %v703 = vmul.f32 %v692, %v677
    %v704 = vsub.f32 %v702, %v703
    %v705 = vmul.f32 %v690, %v684
    %v706 = vadd.f32 %v704, %v705
    %v707 = vmul.f32 %v686, %v677
    %v708 = vmul.f32 %v688, %v684
    %v709 = vsub.f32 %v707, %v708
    %v710 = vmul.f32 %v690, %v663
    %v711 = vadd.f32 %v709, %v710
    %v712 = vmul.f32 %v692, %v670
    %v713 = vadd.f32 %v711, %v712
    %v714 = vmul.f32 %v686, %v684
    %v715 = vmul.f32 %v688, %v677
    %v716 = vadd.f32 %v714, %v715
    %v717 = vmul.f32 %v692, %v663
    %v718 = vadd.f32 %v716, %v717
    %v719 = vmul.f32 %v690, %v670
    %v720 = vsub.f32 %v718, %v719
    %v722 = vrot.slane %v25, 1
    %v724 = vmul.f32 %v699, %v722
    %725 = vrot.lane.b32.xlu0 %v722, 126
    %v726 = vpop.permute.xlu0 %725
    %v728 = vmul.f32 %v706, %v726
    %v729 = vsub.f32 %v724, %v728
    %730 = vrot.lane.b32.xlu0 %v722, 127
    %v731 = vpop.permute.xlu0 %730
    %v733 = vmul.f32 %v713, %v731
    %v734 = vadd.f32 %v729, %v733
    %735 = vrot.lane.b32.xlu0 %v722, 125
    %v736 = vpop.permute.xlu0 %735
    %v738 = vmul.f32 %v720, %v736
    %v739 = vsub.f32 %v734, %v738
    %v740 = vmul.f32 %v699, %v726
    %v741 = vmul.f32 %v706, %v722
    %v742 = vadd.f32 %v740, %v741
    %v743 = vmul.f32 %v713, %v736
    %v744 = vadd.f32 %v742, %v743
    %v745 = vmul.f32 %v720, %v731
    %v746 = vadd.f32 %v744, %v745
    %v747 = vsel %vm30, 1.0, 2.0
    %v748 = vstv %s27
    %v749 = vmul.f32 %v747, %v748
    %v750 = vsel %vm30, 0.0, 3.1415927
    %v751 = vadd.f32 %v749, %v750
    %v752 = vand.u32 2147483647, %v751
    %vm753 = vcmp.le.f32.partialorder %v752, 0.7853982
    %vm754 = vcmp.lt.s32.totalorder %v751, 0
    %v755 = vand.u32 %v751, 2139095040
    %v756 = vshrl.u32 %v755, 23
    %v757 = vsub.s32 %v756, 127
    %v758 = vand.u32 2147483647, %v751
    %v759 = vand.u32 %v758, 8388607
    %v760 = vor.u32 %v759, 8388608
    %v761 = vsub.s32 0, %v760
    %v762 = vadd.s32 %v757, 1
    %vm763 = vcmp.gt.s32.totalorder %v762, 0
    %v764 = vsel %vm763, %v762, 0
    %v765 = vshrl.u32 %v764, 5
    %v766 = vand.u32 %v764, 31
    %v767 = vsub.s32 32, %v766
    %v768 = vshrl.u32 683565275, %v767
    %v769 = vshll.u32 683565275, %v766
    %v770 = vshrl.u32 2475754826, %v767
    %v771 = vor.u32 %v769, %v770
    %v772 = vshll.u32 2475754826, %v766
    %v773 = vshrl.u32 2131351028, %v767
    %v774 = vor.u32 %v772, %v773
    %v775 = vshll.u32 2131351028, %v766
    %v776 = vshrl.u32 2102212464, %v767
    %v777 = vor.u32 %v775, %v776
    %v778 = vshll.u32 2102212464, %v766
    %v779 = vshrl.u32 920167782, %v767
    %v780 = vor.u32 %v778, %v779
    %v781 = vshll.u32 920167782, %v766
    %v782 = vshrl.u32 1326507024, %v767
    %v783 = vor.u32 %v781, %v782
    %vm784 = vcmp.lt.s32.totalorder %v765, 1
    %vm785 = vcmp.lt.s32.totalorder %v765, 2
    %vm786 = vcmp.lt.s32.totalorder %v765, 3
    %vm787 = vcmp.lt.s32.totalorder %v765, 4
    %v788 = vsel %vm784, %v768, %v771
    %v789 = vsel %vm787, %v777, 2102212464
    %v790 = vsel %vm786, %v774, %v789
    %v791 = vsel %vm785, %v788, %v790
    %v792 = vsel %vm784, %v771, %v774
    %v793 = vsel %vm787, %v780, 920167782
    %v794 = vsel %vm786, %v777, %v793
    %v795 = vsel %vm785, %v792, %v794
    %v796 = vsel %vm784, %v774, %v777
    %v797 = vsel %vm787, %v783, 1326507024
    %v798 = vsel %vm786, %v780, %v797
    %v799 = vsel %vm785, %v796, %v798
    %v800 = vshll.u32 %v760, 8
    %v801 = vmul.u32.u64.compose %v800, %v799
    %v802 = vextract.low.u32 %v801
    %v803 = vextract.high.u32 %v801
    %v804 = vmul.u32.u64.compose %v800, %v795
    %v805 = vextract.low.u32 %v804
    %v806 = vextract.high.u32 %v804
    %v807 = vmul.u32 %v800, %v791
    %v808 = vadd.s32 %v803, %v805
    %vm809 = vc.u32 %v803, %v805
    %v810 = vadd.s32 %v806, 1
    %v811 = vsel %vm809, %v810, %v806
    %v812 = vadd.s32 %v807, %v811
    %v813 = vadd.s32 %v812, 536870912
    %v814 = vshrl.u32 %v813, 30
    %v815 = vshll.u32 %v814, 30
    %v816 = vsub.s32 %v812, %v815
    %vm817 = vcmp.lt.s32.totalorder %v816, 0
    %v818 = vsub.s32 0, %v816
    %v819 = vsel %vm817, %v818, %v816
    %v820 = vclz %v819
    %v821 = vsub.s32 %v820, 2
    %vm822 = vcmp.gt.s32.totalorder 0, %v821
    %v823 = vsel %vm822, 0, %v821
    %v824 = vsub.s32 32, %v823
    %v825 = vshll.u32 %v816, %v823
    %v826 = vshrl.u32 %v808, %v824
    %v827 = vor.u32 %v825, %v826
    %v828 = vsub.s32 4294967266, %v823
    %v829 = vadd.s32 %v828, 127
    %v830 = vshll.u32 %v829, 23
    %v831 = vor.u32 4788187, %v830
    %v832 = vand.u32 2147483647, %v831
    %v834 = vcvt.s32.f32 %v827
    %v835 = vmul.f32 %v834, %v832
    %v836 = vxor.u32 %v835, 2147483648
    %v837 = vsel %vm754, %v836, %v835
    %v838 = vsub.s32 4, %v814
    %v839 = vsel %vm754, %v838, %v814
    %v840 = vsel %vm753, %v751, %v837
    %v841 = vsel %vm753, 0, %v839
    %v842 = vcosq.f32.pop %v840
    %v843 = vsinq.f32.pop %v840
    %vm844 = vweird.f32 %v751
    %v845 = vand.u32 %v841, 3
    %vm846 = vcmp.lt.s32.totalorder %v845, 2
    %vm847 = vcmp.eq.s32.totalorder %v845, 0
    %v848 = vxor.u32 %v843, 2147483648
    %v849 = vsel %vm847, %v842, %v848
    %vm850 = vcmp.eq.s32.totalorder %v845, 2
    %v851 = vxor.u32 %v842, 2147483648
    %v852 = vsel %vm850, %v851, %v843
    %v853 = vsel %vm846, %v849, %v852
    %v854 = vsel %vm844, nan, %v853
    %v855 = vand.u32 2147483647, %v751
    %vm856 = vcmp.le.f32.partialorder %v855, 0.7853982
    %vm857 = vcmp.lt.s32.totalorder %v751, 0
    %v858 = vand.u32 %v751, 2139095040
    %v859 = vshrl.u32 %v858, 23
    %v860 = vsub.s32 %v859, 127
    %v861 = vand.u32 2147483647, %v751
    %v862 = vand.u32 %v861, 8388607
    %v863 = vor.u32 %v862, 8388608
    %v864 = vsub.s32 0, %v863
    %v865 = vadd.s32 %v860, 1
    %vm866 = vcmp.gt.s32.totalorder %v865, 0
    %v867 = vsel %vm866, %v865, 0
    %v868 = vshrl.u32 %v867, 5
    %v869 = vand.u32 %v867, 31
    %v870 = vsub.s32 32, %v869
    %v871 = vshrl.u32 683565275, %v870
    %v872 = vshll.u32 683565275, %v869
    %v873 = vshrl.u32 2475754826, %v870
    %v874 = vor.u32 %v872, %v873
    %v875 = vshll.u32 2475754826, %v869
    %v876 = vshrl.u32 2131351028, %v870
    %v877 = vor.u32 %v875, %v876
    %v878 = vshll.u32 2131351028, %v869
    %v879 = vshrl.u32 2102212464, %v870
    %v880 = vor.u32 %v878, %v879
    %v881 = vshll.u32 2102212464, %v869
    %v882 = vshrl.u32 920167782, %v870
    %v883 = vor.u32 %v881, %v882
    %v884 = vshll.u32 920167782, %v869
    %v885 = vshrl.u32 1326507024, %v870
    %v886 = vor.u32 %v884, %v885
    %vm887 = vcmp.lt.s32.totalorder %v868, 1
    %vm888 = vcmp.lt.s32.totalorder %v868, 2
    %vm889 = vcmp.lt.s32.totalorder %v868, 3
    %vm890 = vcmp.lt.s32.totalorder %v868, 4
    %v891 = vsel %vm887, %v871, %v874
    %v892 = vsel %vm890, %v880, 2102212464
    %v893 = vsel %vm889, %v877, %v892
    %v894 = vsel %vm888, %v891, %v893
    %v895 = vsel %vm887, %v874, %v877
    %v896 = vsel %vm890, %v883, 920167782
    %v897 = vsel %vm889, %v880, %v896
    %v898 = vsel %vm888, %v895, %v897
    %v899 = vsel %vm887, %v877, %v880
    %v900 = vsel %vm890, %v886, 1326507024
    %v901 = vsel %vm889, %v883, %v900
    %v902 = vsel %vm888, %v899, %v901
    %v903 = vshll.u32 %v863, 8
    %v904 = vmul.u32.u64.compose %v903, %v902
    %v905 = vextract.low.u32 %v904
    %v906 = vextract.high.u32 %v904
    %v907 = vmul.u32.u64.compose %v903, %v898
    %v908 = vextract.low.u32 %v907
    %v909 = vextract.high.u32 %v907
    %v910 = vmul.u32 %v903, %v894
    %v911 = vadd.s32 %v906, %v908
    %vm912 = vc.u32 %v906, %v908
    %v913 = vadd.s32 %v909, 1
    %v914 = vsel %vm912, %v913, %v909
    %v915 = vadd.s32 %v910, %v914
    %v916 = vadd.s32 %v915, 536870912
    %v917 = vshrl.u32 %v916, 30
    %v918 = vshll.u32 %v917, 30
    %v919 = vsub.s32 %v915, %v918
    %vm920 = vcmp.lt.s32.totalorder %v919, 0
    %v921 = vsub.s32 0, %v919
    %v922 = vsel %vm920, %v921, %v919
    %v923 = vclz %v922
    %v924 = vsub.s32 %v923, 2
    %vm925 = vcmp.gt.s32.totalorder 0, %v924
    %v926 = vsel %vm925, 0, %v924
    %v927 = vsub.s32 32, %v926
    %v928 = vshll.u32 %v919, %v926
    %v929 = vshrl.u32 %v911, %v927
    %v930 = vor.u32 %v928, %v929
    %v931 = vsub.s32 4294967266, %v926
    %v932 = vadd.s32 %v931, 127
    %v933 = vshll.u32 %v932, 23
    %v934 = vor.u32 4788187, %v933
    %v935 = vand.u32 2147483647, %v934
    %v937 = vcvt.s32.f32 %v930
    %v938 = vmul.f32 %v937, %v935
    %v939 = vxor.u32 %v938, 2147483648
    %v940 = vsel %vm857, %v939, %v938
    %v941 = vsub.s32 4, %v917
    %v942 = vsel %vm857, %v941, %v917
    %v943 = vsel %vm856, %v751, %v940
    %v944 = vsel %vm856, 0, %v942
    %v945 = vcosq.f32.pop %v943
    %v946 = vsinq.f32.pop %v943
    %vm947 = vweird.f32 %v751
    %v948 = vadd.s32 %v944, 3
    %v949 = vand.u32 %v948, 3
    %vm950 = vcmp.lt.s32.totalorder %v949, 2
    %vm951 = vcmp.eq.s32.totalorder %v949, 0
    %v952 = vxor.u32 %v946, 2147483648
    %v953 = vsel %vm951, %v945, %v952
    %vm954 = vcmp.eq.s32.totalorder %v949, 2
    %v955 = vxor.u32 %v945, 2147483648
    %v956 = vsel %vm954, %v955, %v946
    %v957 = vsel %vm950, %v953, %v956
    %v958 = vsel %vm947, nan, %v957
    %v959 = vmul.f32 %v854, %v739
    %v960 = vmul.f32 %v958, %v746
    %v961 = vadd.f32 %v959, %v960
    %v962 = vmul.f32 %v854, %v746
    %v963 = vmul.f32 %v958, %v739
    %v964 = vsub.f32 %v962, %v963
    %v965 = vmul.f32 %v961, 2.0
    %v966 = vadd.f32 %v965, 1.0
    %v968 = vrot.slane %v961, 1
    %v970 = vadd.f32 %v966, %v968
    %v971 = vmul.f32 %v964, 2.0
    %v973 = vrot.slane %v964, 1
    %v975 = vadd.f32 %v971, %v973
    %v976 = vmul.f32 %v970, %v970
    %v977 = vmul.f32 %v975, %v975
    %v978 = vadd.f32 %v976, %v977
    %v979 = vadd.f32 %v978, 1.0
    %v980 = vmul.f32 %v961, %v961
    %v981 = vmul.f32 %v964, %v964
    %v982 = vadd.f32 %v980, %v981
    %v983 = vmul.f32 %v982, 2.0
    %v984 = vadd.f32 %v979, %v983
    %v986 = vrot.slane %v980, 1
    %v988 = vadd.f32 %v984, %v986
    %v990 = vrot.slane %v981, 1
    %v992 = vadd.f32 %v988, %v990
    %v993 = vmul.f32 %v992, 0.05
    %v994 = vmax.f32 %v993, 0.0
    %v995 = vmin.f32 %v994, 1.0
    %vm996 = vcmask 0
    %997 = vst.msk [vmem:[#allocation5] sm:$0x1] %vm996, %v995
    // Predicated region
    $region14: #{qubits2_forward.1} parent=1 // pred_check
      _
    $region15: #{qubits2_forward.1} parent=1 // pred_check_branch
      %999 = sbr.rel (0) target = $region17
    $region16: #{qubits2_forward.1} parent=1 // pred_region
      %s1001 = ssub.s32 16, 16
      %1002 = vsyncadd [#allocation3], %s1001
      %s1004 = sshll.u32 [#allocation5], 4
      %s1005 = int_to_ptr.vmem [resolvable:$true] %s1004
      %1007 = dma.vmem_to_hbm [thread:$0]  %s1005, 16, %s2, [#allocation3]
    $region17: #{qubits2_forward.1} parent=1 // pred_fallthru
      _
    // Predicated region
    $region18: #{qubits2_forward.1} parent=1 // pred_check
      _
    $region19: #{qubits2_forward.1} parent=1 // pred_check_branch
      %1009 = sbr.rel (0) target = $region21
    $region20: #{qubits2_forward.1} parent=1 // pred_region
      %1010 = dma.done [#allocation3], 16
    $region21: #{qubits2_forward.1} parent=1 // pred_fallthru
      _
    %1011 = vsyncpa [#allocation3], 1
    %1012 = vsyncpa [#allocation4], 1

</llo_original>
